<compile_context>
chip_gen: v6e
topology: v6e:2x2x1
jax: 0.10.0
libtpu: 0.0.40
codegen_flags: <defaults>
</compile_context>

<pallas_src>
import functools

import jax
import jax.numpy as jnp
from jax.experimental import pallas as pl
from jax.experimental.pallas import tpu as pltpu

_LANE = 128


def _round_up(x, m):
    return (x + m - 1) // m * m


def _vmem_budget_bytes():
    """Generation-aware VMEM cap: ~80% of physical per-core VMEM, safe fallback."""
    cap = None
    try:
        info = pltpu.get_tpu_info()
        cap = getattr(info, "vmem_capacity_bytes", None)
    except Exception:
        cap = None
    if not cap:
        cap = 64 << 20  # conservative fallback: v7x per-core VMEM
    return max(32 << 20, int(int(cap) * 0.8))


def _default_block_rows():
    """256-deep A slabs fill the 2x256x256 MXUs on v6e/v7x; 128 matches v5e."""
    try:
        kind = jax.devices()[0].device_kind.lower()
    except Exception:
        kind = ""
    return 128 if "v5" in kind else 256


# --------------------------------------------------------------------------- #
# Path A: whole graph resident in VMEM (small/medium graphs).                  #
# --------------------------------------------------------------------------- #
def _resident_gcn_kernel(*refs, num_layers, ax_first):
    """refs = (adj, x, w_0..w_{L-1}, out); adj/x/w pre-cast bf16, out f32."""
    adj_ref = refs[0]
    x_ref = refs[1]
    w_refs = refs[2:2 + num_layers]
    out_ref = refs[2 + num_layers]

    a = adj_ref[...]          # bf16 (0/1, exact)
    h = x_ref[...]            # bf16
    for i in range(num_layers):
        w = w_refs[i][...]    # bf16
        if ax_first[i]:
            # (A @ H) @ W  -- cheaper when the layer widens (padded dims)
            ah = jnp.dot(a, h, preferred_element_type=jnp.float32)
            z = jnp.dot(ah.astype(jnp.bfloat16), w,
                        preferred_element_type=jnp.float32)
        else:
            # A @ (H @ W)  -- cheaper when the layer narrows
            hw = jnp.dot(h, w, preferred_element_type=jnp.float32)
            z = jnp.dot(a, hw.astype(jnp.bfloat16),
                        preferred_element_type=jnp.float32)
        if i != num_layers - 1:
            h = jnp.tanh(z).astype(jnp.bfloat16)   # f32 tanh (EUP), single cast
        else:
            out_ref[...] = z.astype(out_ref.dtype)


# --------------------------------------------------------------------------- #
# Path B: A streamed in row slabs, H resident in VMEM scratch (large graphs).  #
# --------------------------------------------------------------------------- #
def _streaming_gcn_kernel(adj_ref, x_ref, w_ref, out_ref, h_a, h_b,
                          *, num_layers, block_rows):
    """grid = (num_layers, num_row_blocks); H ping-pongs between h_a / h_b."""
    l = pl.program_id(0)
    i = pl.program_id(1)
    last = l == num_layers - 1

    @pl.when((l == 0) & (i == 0))
    def _():
        h_a[...] = x_ref[...]           # layer-0 input H = features

    row0 = pl.multiple_of(i * block_rows, block_rows)
    w = w_ref[0]                        # (F_max, F_max) bf16

    def step(src_ref, dst_ref):
        a_slab = adj_ref[...]           # (block_rows, N_pad) bf16, pipelined DMA
        ah = jnp.dot(a_slab, src_ref[...], preferred_element_type=jnp.float32)
        z = jnp.dot(ah.astype(jnp.bfloat16), w,
                    preferred_element_type=jnp.float32)

        @pl.when(last)
        def _():
            out_ref[...] = z.astype(out_ref.dtype)

        @pl.when(jnp.logical_not(last))
        def _():
            dst_ref[pl.ds(row0, block_rows), :] = jnp.tanh(z).astype(dst_ref.dtype)

    @pl.when(l % 2 == 0)
    def _():
        step(h_a, h_b)

    @pl.when(l % 2 == 1)
    def _():
        step(h_b, h_a)


# --------------------------------------------------------------------------- #
# Wrapper                                                                      #
# --------------------------------------------------------------------------- #
def dgl_gcn_net_forward(adj, features, weights, *, block_rows=None,
                        force_streaming=False):
    """Forward pass of DglGCNNet: tanh on all layers except the last.

    adj:      (N, N) dense float32 adjacency (sum aggregation).
    features: (N, F) float32 node features.
    weights:  list of (F_in, F_out) float32 GraphConv weights.
    """
    n, f = features.shape
    num_layers = len(weights)
    num_classes = weights[-1].shape[1]
    budget = _vmem_budget_bytes()

    f_pad = _round_up(f, _LANE)
    n_pad128 = _round_up(n, _LANE)
    w_pad_shapes = [(_round_up(w.shape[0], _LANE), _round_up(w.shape[1], _LANE))
                    for w in weights]
    out_cols = w_pad_shapes[-1][1]
    f_max_res = max([f_pad] + [s for pair in w_pad_shapes for s in pair])

    resident_bytes = (
        2 * n_pad128 * n_pad128                      # A bf16 (single-buffered)
        + 2 * n_pad128 * f_pad                       # X bf16
        + sum(2 * a * b for a, b in w_pad_shapes)    # weights bf16
        + 4 * n_pad128 * out_cols                    # f32 output buffer
        + 12 * n_pad128 * f_max_res                  # f32/bf16 working set (rough)
    )
    use_resident = (not force_streaming) and resident_bytes <= int(budget * 0.75)

    if use_resident:
        # ---------------- fully-resident path (no grid, no double-buffering) ----
        # TODO(synk): if adj is static across calls, hoist this pad+cast out of
        # the per-call path (it rewrites an O(N^2) HBM buffer every call).
        adj_p = jnp.zeros((n_pad128, n_pad128), jnp.bfloat16).at[:n, :n].set(
            adj.astype(jnp.bfloat16))
        x_p = jnp.zeros((n_pad128, f_pad), jnp.bfloat16).at[:n, :f].set(
            features.astype(jnp.bfloat16))
        w_ps, ax_first = [], []
        for w, (fi_p, fo_p) in zip(weights, w_pad_shapes):
            fi, fo = w.shape
            ax_first.append(fi_p <= fo_p)   # decided on padded (real MXU) dims
            w_ps.append(jnp.zeros((fi_p, fo_p), jnp.bfloat16)
                        .at[:fi, :fo].set(w.astype(jnp.bfloat16)))
        ax_first = tuple(ax_first)

        flops, transcendentals = 0, 0
        fin = f_pad
        for idx, (fi_p, fo_p) in enumerate(w_pad_shapes):
            if ax_first[idx]:
                flops += 2 * n_pad128 * n_pad128 * fin + 2 * n_pad128 * fin * fo_p
            else:
                flops += 2 * n_pad128 * fin * fo_p + 2 * n_pad128 * n_pad128 * fo_p
            if idx != num_layers - 1:
                transcendentals += n_pad128 * fo_p
            fin = fo_p
        bytes_accessed = (2 * (adj_p.size + x_p.size
                               + sum(int(wp.size) for wp in w_ps))
                          + 4 * n_pad128 * out_cols)

        kernel = functools.partial(_resident_gcn_kernel,
                                   num_layers=num_layers, ax_first=ax_first)
        vmem_spec = pl.BlockSpec(memory_space=pltpu.MemorySpace.VMEM)
        out_p = pl.pallas_call(
            kernel,
            out_shape=jax.ShapeDtypeStruct((n_pad128, out_cols), jnp.float32),
            in_specs=[vmem_spec] * (2 + num_layers),
            out_specs=vmem_spec,
            compiler_params=pltpu.CompilerParams(vmem_limit_bytes=budget),
            cost_estimate=pl.CostEstimate(
                flops=int(flops), transcendentals=int(transcendentals),
                bytes_accessed=int(bytes_accessed)),
        )(adj_p, x_p, *w_ps)
        return out_p[:n, :num_classes]

    # -------------------- streaming path: A row slabs, H resident -------------
    tm = block_rows if block_rows is not None else _default_block_rows()
    n_pad = _round_up(n, max(tm, _LANE))
    num_blocks = n_pad // tm
    f_all = [f] + [w.shape[0] for w in weights] + [w.shape[1] for w in weights]
    f_max = _round_up(max(f_all), _LANE)

    # TODO(synk): hoist pad+cast of adj out of the per-call path for static graphs.
    adj_p = jnp.zeros((n_pad, n_pad), jnp.bfloat16).at[:n, :n].set(
        adj.astype(jnp.bfloat16))
    x_p = jnp.zeros((n_pad, f_max), jnp.bfloat16).at[:n, :f].set(
        features.astype(jnp.bfloat16))
    w_stack = jnp.zeros((num_layers, f_max, f_max), jnp.bfloat16)
    for idx, w in enumerate(weights):
        fi, fo = w.shape
        w_stack = w_stack.at[idx, :fi, :fo].set(w.astype(jnp.bfloat16))

    flops = num_layers * (2 * n_pad * n_pad * f_max + 2 * n_pad * f_max * f_max)
    transcendentals = (num_layers - 1) * n_pad * f_max
    bytes_accessed = (2 * (num_layers * n_pad * n_pad + n_pad * f_max
                           + num_layers * f_max * f_max)
                      + 4 * n_pad * f_max)

    kernel = functools.partial(_streaming_gcn_kernel,
                               num_layers=num_layers, block_rows=tm)
    out_p = pl.pallas_call(
        kernel,
        out_shape=jax.ShapeDtypeStruct((n_pad, f_max), jnp.float32),
        grid=(num_layers, num_blocks),
        in_specs=[
            pl.BlockSpec((tm, n_pad), lambda l, i: (i, 0)),           # A row slab
            pl.BlockSpec((n_pad, f_max), lambda l, i: (0, 0)),        # X (fetched once)
            pl.BlockSpec((1, f_max, f_max), lambda l, i: (l, 0, 0)),  # W_l per layer
        ],
        out_specs=pl.BlockSpec((tm, f_max), lambda l, i: (i, 0)),
        scratch_shapes=[pltpu.VMEM((n_pad, f_max), jnp.bfloat16),
                        pltpu.VMEM((n_pad, f_max), jnp.bfloat16)],
        compiler_params=pltpu.CompilerParams(
            dimension_semantics=("arbitrary", "arbitrary"),
            vmem_limit_bytes=budget),
        cost_estimate=pl.CostEstimate(
            flops=int(flops), transcendentals=int(transcendentals),
            bytes_accessed=int(bytes_accessed)),
    )(adj_p, x_p, w_stack)
    return out_p[:n, :num_classes]


# --------------------------------------------------------------------------- #
# Reference / init / test                                                      #
# --------------------------------------------------------------------------- #
def _reference_forward(adj, features, weights):
    """True f32 reference (HIGHEST precision matmuls)."""
    h = features
    for i, w in enumerate(weights):
        hw = jnp.dot(h, w, precision=jax.lax.Precision.HIGHEST)
        h = jnp.dot(adj, hw, precision=jax.lax.Precision.HIGHEST)
        if i != len(weights) - 1:
            h = jnp.tanh(h)
    return h


def init_weights(key, num_feats, num_classes, num_hidden, num_layers):
    """Xavier-uniform-ish init matching GraphConv weight shapes."""
    dims = []
    for i in range(num_layers):
        if i == 0:
            dims.append((num_feats, num_hidden))
        elif i == num_layers - 1:
            dims.append((num_hidden, num_classes))
        else:
            dims.append((num_hidden, num_hidden))
    weights = []
    for i, (fin, fout) in enumerate(dims):
        k = jax.random.fold_in(key, i)
        bound = (6.0 / (fin + fout)) ** 0.5
        weights.append(
            jax.random.uniform(k, (fin, fout), jnp.float32, -bound, bound))
    return weights


if __name__ == "__main__":
    key = jax.random.PRNGKey(0)

    def make_graph(k, n, p):
        a = (jax.random.uniform(k, (n, n)) < p).astype(jnp.float32)
        a = jnp.maximum(a, a.T)
        return jnp.maximum(a, jnp.eye(n, dtype=jnp.float32))

    k1, k2, k3, k4, k5, k6 = jax.random.split(key, 6)

    # -- test 1: small graph -> fully-resident path ---------------------------
    n1, f1, hid1, cls1, L1 = 16, 8, 32, 4, 3
    adj1 = make_graph(k1, n1, 0.3)
    x1 = jax.random.normal(k2, (n1, f1), jnp.float32)
    w1 = init_weights(k3, f1, cls1, hid1, L1)
    out1 = jax.block_until_ready(dgl_gcn_net_forward(adj1, x1, w1))
    assert out1.shape == (n1, cls1), out1.shape
    ref1 = _reference_forward(adj1, x1, w1)
    err1 = float(jnp.max(jnp.abs(out1 - ref1)))
    tol1 = 5e-2 * (1.0 + float(jnp.max(jnp.abs(ref1))))
    assert err1 < tol1, f"resident path error {err1} >= {tol1}"

    # -- test 2: larger graph, forced A-row-slab streaming path ---------------
    n2, f2, hid2, cls2, L2 = 200, 12, 48, 6, 3
    adj2 = make_graph(k4, n2, 0.04)
    x2 = jax.random.normal(k5, (n2, f2), jnp.float32)
    w2 = init_weights(k6, f2, cls2, hid2, L2)
    out2 = jax.block_until_ready(
        dgl_gcn_net_forward(adj2, x2, w2, force_streaming=True, block_rows=128))
    assert out2.shape == (n2, cls2), out2.shape
    ref2 = _reference_forward(adj2, x2, w2)
    err2 = float(jnp.max(jnp.abs(out2 - ref2)))
    tol2 = 5e-2 * (1.0 + float(jnp.max(jnp.abs(ref2))))
    assert err2 < tol2, f"streaming path error {err2} >= {tol2}"

    print("KERNEL_OK")
</pallas_src>

<mosaic_0001>
module attributes {stable_mosaic.version = 11 : i64} {
  func.func @_resident_gcn_kernel(%arg0: memref<128x128xbf16, #tpu.memory_space<vmem>>, %arg1: memref<128x128xbf16, #tpu.memory_space<vmem>>, %arg2: memref<128x128xbf16, #tpu.memory_space<vmem>>, %arg3: memref<128x128xbf16, #tpu.memory_space<vmem>>, %arg4: memref<128x128xbf16, #tpu.memory_space<vmem>>, %arg5: memref<128x128xf32, #tpu.memory_space<vmem>>) attributes {dimension_semantics = [], scalar_prefetch = 0 : i64, scratch_operands = 0 : i64, tpu.core_type = #tpu.core_type<tc>} {
    %c0 = arith.constant 0 : index
    %c0_0 = arith.constant 0 : index
    %0 = vector.load %arg0[%c0, %c0_0] : memref<128x128xbf16, #tpu.memory_space<vmem>>, vector<128x128xbf16>
    %c0_1 = arith.constant 0 : index
    %c0_2 = arith.constant 0 : index
    %1 = vector.load %arg1[%c0_1, %c0_2] : memref<128x128xbf16, #tpu.memory_space<vmem>>, vector<128x128xbf16>
    %c0_3 = arith.constant 0 : index
    %c0_4 = arith.constant 0 : index
    %2 = vector.load %arg2[%c0_3, %c0_4] : memref<128x128xbf16, #tpu.memory_space<vmem>>, vector<128x128xbf16>
    %cst = arith.constant dense<0.000000e+00> : vector<128x128xf32>
    %3 = tpu.matmul %0, %1, %cst {dimension_numbers = #tpu.dot_dimension_numbers<[1], [0], [0], [1], [0, 0, 1, 1], [], []>} : vector<128x128xbf16>, vector<128x128xbf16>, vector<128x128xf32> -> vector<128x128xf32>
    %4 = arith.truncf %3 : vector<128x128xf32> to vector<128x128xbf16>
    %cst_5 = arith.constant dense<0.000000e+00> : vector<128x128xf32>
    %5 = tpu.matmul %4, %2, %cst_5 {dimension_numbers = #tpu.dot_dimension_numbers<[1], [0], [0], [1], [0, 0, 1, 1], [], []>} : vector<128x128xbf16>, vector<128x128xbf16>, vector<128x128xf32> -> vector<128x128xf32>
    %6 = math.tanh %5 : vector<128x128xf32>
    %7 = arith.truncf %6 : vector<128x128xf32> to vector<128x128xbf16>
    %c0_6 = arith.constant 0 : index
    %c0_7 = arith.constant 0 : index
    %8 = vector.load %arg3[%c0_6, %c0_7] : memref<128x128xbf16, #tpu.memory_space<vmem>>, vector<128x128xbf16>
    %cst_8 = arith.constant dense<0.000000e+00> : vector<128x128xf32>
    %9 = tpu.matmul %0, %7, %cst_8 {dimension_numbers = #tpu.dot_dimension_numbers<[1], [0], [0], [1], [0, 0, 1, 1], [], []>} : vector<128x128xbf16>, vector<128x128xbf16>, vector<128x128xf32> -> vector<128x128xf32>
    %10 = arith.truncf %9 : vector<128x128xf32> to vector<128x128xbf16>
    %cst_9 = arith.constant dense<0.000000e+00> : vector<128x128xf32>
    %11 = tpu.matmul %10, %8, %cst_9 {dimension_numbers = #tpu.dot_dimension_numbers<[1], [0], [0], [1], [0, 0, 1, 1], [], []>} : vector<128x128xbf16>, vector<128x128xbf16>, vector<128x128xf32> -> vector<128x128xf32>
    %12 = math.tanh %11 : vector<128x128xf32>
    %13 = arith.truncf %12 : vector<128x128xf32> to vector<128x128xbf16>
    %c0_10 = arith.constant 0 : index
    %c0_11 = arith.constant 0 : index
    %14 = vector.load %arg4[%c0_10, %c0_11] : memref<128x128xbf16, #tpu.memory_space<vmem>>, vector<128x128xbf16>
    %cst_12 = arith.constant dense<0.000000e+00> : vector<128x128xf32>
    %15 = tpu.matmul %0, %13, %cst_12 {dimension_numbers = #tpu.dot_dimension_numbers<[1], [0], [0], [1], [0, 0, 1, 1], [], []>} : vector<128x128xbf16>, vector<128x128xbf16>, vector<128x128xf32> -> vector<128x128xf32>
    %16 = arith.truncf %15 : vector<128x128xf32> to vector<128x128xbf16>
    %cst_13 = arith.constant dense<0.000000e+00> : vector<128x128xf32>
    %17 = tpu.matmul %16, %14, %cst_13 {dimension_numbers = #tpu.dot_dimension_numbers<[1], [0], [0], [1], [0, 0, 1, 1], [], []>} : vector<128x128xbf16>, vector<128x128xbf16>, vector<128x128xf32> -> vector<128x128xf32>
    %c0_14 = arith.constant 0 : index
    %c0_15 = arith.constant 0 : index
    %18 = vector.load %arg5[%c0_14, %c0_15] : memref<128x128xf32, #tpu.memory_space<vmem>>, vector<128x128xf32>
    tpu.vector_store %arg5[%c0_14, %c0_15], %17 {strides = array<i32>} : memref<128x128xf32, #tpu.memory_space<vmem>>, vector<128x128xf32>,
    return
  }
}

</mosaic_0001>

<llo_original>
// kernel: tpu_custom_call.1
$region0: #{tpu_custom_call.1}
  #allocation0 [shape = 'u32[]', space=smem, size = 0x4, offset = 0x4, fixed_abs, tag = 'smem constant byte address 0x4 - core index']
  #allocation1 [shape = 'u32[144,128]{1,0:T(1,128)}', space=vmem, size = 0x12000, scoped, tag = 'internal scratch']
  %s0 = inlined_call_operand.hbm [shape: bf16[128,128], index: 0, kind: input, shape index: {}]
  %s1 = inlined_call_operand.hbm [shape: bf16[128,128], index: 1, kind: input, shape index: {}]
  %s2 = inlined_call_operand.hbm [shape: bf16[128,128], index: 2, kind: input, shape index: {}]
  %s3 = inlined_call_operand.hbm [shape: bf16[128,128], index: 3, kind: input, shape index: {}]
  %s4 = inlined_call_operand.hbm [shape: bf16[128,128], index: 4, kind: input, shape index: {}]
  %s5 = inlined_call_operand.hbm [shape: f32[128,128], index: 5, kind: output, shape index: {}]
  %s6 = sld [smem:[#allocation0]]
  $region50: #{tpu_custom_call.1} parent=0
    _
  %s8 = ssub.s32 1, %s6
  %s9 = scalar_select 0, %s8, %s6
  $region1: #{tpu_custom_call.1} parent=0
    #allocation2 [shape = 'u8[32768]{0}', space=vmem, size = 0x8000, scoped, tag = 'input window, operand 0, single buffered']
    #allocation3 [shape = 's32[1]{0}', space=sflag, size = 0x4, scoped, tag = 'scoped memory for tpu_custom_call.1']
    #allocation4 [shape = 's32[1]{0}', space=sflag, size = 0x4, scoped, tag = 'scoped memory for tpu_custom_call.1']
    #allocation5 [shape = 'u8[32768]{0}', space=vmem, size = 0x8000, scoped, tag = 'input window, operand 1, single buffered']
    #allocation6 [shape = 's32[1]{0}', space=sflag, size = 0x4, scoped, tag = 'scoped memory for tpu_custom_call.1']
    #allocation7 [shape = 'u8[32768]{0}', space=vmem, size = 0x8000, scoped, tag = 'input window, operand 2, single buffered']
    #allocation8 [shape = 'u8[32768]{0}', space=vmem, size = 0x8000, scoped, tag = 'input window, operand 3, single buffered']
    #allocation9 [shape = 's32[1]{0}', space=sflag, size = 0x4, scoped, tag = 'scoped memory for tpu_custom_call.1']
    #allocation10 [shape = 'u8[32768]{0}', space=vmem, size = 0x8000, scoped, tag = 'input window, operand 4, single buffered']
    #allocation11 [shape = 'u8[65536]{0}', space=vmem, size = 0x10000, scoped, tag = 'output window, operand 0, single buffered']
    %10 = vsyncpa [#allocation3], 0
    %11 = vsyncpa [#allocation6], 0
    %12 = vsyncpa [#allocation9], 0
    %13 = vsyncpa [#allocation4], 0
    // Predicated region
    $region2: #{tpu_custom_call.1} parent=1 // pred_check
      _
    $region3: #{tpu_custom_call.1} parent=1 // pred_check_branch
      %15 = sbr.rel (0) target = $region5
    $region4: #{tpu_custom_call.1} parent=1 // pred_region
      %s17 = ssub.s32 1024, 1024
      %18 = vsyncadd [#allocation3], %s17
      %s19 = sshll.u32 [#allocation2], 4
      %s20 = int_to_ptr.vmem [resolvable:$true] %s19
      %25 = dma.hbm_to_vmem [thread:$0]  %s0, 1024, %s20, [#allocation3], 64, 64, 4
    $region5: #{tpu_custom_call.1} parent=1 // pred_fallthru
      _
    // Predicated region
    $region6: #{tpu_custom_call.1} parent=1 // pred_check
      _
    $region7: #{tpu_custom_call.1} parent=1 // pred_check_branch
      %27 = sbr.rel (0) target = $region9
    $region8: #{tpu_custom_call.1} parent=1 // pred_region
      %s29 = ssub.s32 1024, 1024
      %30 = vsyncadd [#allocation6], %s29
      %s31 = sshll.u32 [#allocation5], 4
      %s32 = int_to_ptr.vmem [resolvable:$true] %s31
      %37 = dma.hbm_to_vmem [thread:$0]  %s1, 1024, %s32, [#allocation6], 64, 64, 4
    $region9: #{tpu_custom_call.1} parent=1 // pred_fallthru
      _
    // Predicated region
    $region10: #{tpu_custom_call.1} parent=1 // pred_check
      _
    $region11: #{tpu_custom_call.1} parent=1 // pred_check_branch
      %39 = sbr.rel (0) target = $region13
    $region12: #{tpu_custom_call.1} parent=1 // pred_region
      %s41 = ssub.s32 1024, 1024
      %42 = vsyncadd [#allocation6], %s41
      %s43 = sshll.u32 [#allocation7], 4
      %s44 = int_to_ptr.vmem [resolvable:$true] %s43
      %49 = dma.hbm_to_vmem [thread:$0]  %s2, 1024, %s44, [#allocation6], 64, 64, 4
    $region13: #{tpu_custom_call.1} parent=1 // pred_fallthru
      _
    // Predicated region
    $region14: #{tpu_custom_call.1} parent=1 // pred_check
      _
    $region15: #{tpu_custom_call.1} parent=1 // pred_check_branch
      %51 = sbr.rel (0) target = $region17
    $region16: #{tpu_custom_call.1} parent=1 // pred_region
      %s53 = ssub.s32 1024, 1024
      %54 = vsyncadd [#allocation9], %s53
      %s55 = sshll.u32 [#allocation8], 4
      %s56 = int_to_ptr.vmem [resolvable:$true] %s55
      %61 = dma.hbm_to_vmem [thread:$0]  %s3, 1024, %s56, [#allocation9], 64, 64, 4
    $region17: #{tpu_custom_call.1} parent=1 // pred_fallthru
      _
    // Predicated region
    $region18: #{tpu_custom_call.1} parent=1 // pred_check
      _
    $region19: #{tpu_custom_call.1} parent=1 // pred_check_branch
      %63 = sbr.rel (0) target = $region21
    $region20: #{tpu_custom_call.1} parent=1 // pred_region
      %s65 = ssub.s32 1024, 1024
      %66 = vsyncadd [#allocation9], %s65
      %s67 = sshll.u32 [#allocation10], 4
      %s68 = int_to_ptr.vmem [resolvable:$true] %s67
      %73 = dma.hbm_to_vmem [thread:$0]  %s4, 1024, %s68, [#allocation9], 64, 64, 4
    $region21: #{tpu_custom_call.1} parent=1 // pred_fallthru
      _
    // Predicated region
    $region22: #{tpu_custom_call.1} parent=1 // pred_check
      _
    $region23: #{tpu_custom_call.1} parent=1 // pred_check_branch
      %75 = sbr.rel (0) target = $region25
    $region24: #{tpu_custom_call.1} parent=1 // pred_region
      %76 = dma.done [#allocation3], 1024
    $region25: #{tpu_custom_call.1} parent=1 // pred_fallthru
      _
    // Predicated region
    $region26: #{tpu_custom_call.1} parent=1 // pred_check
      _
    $region27: #{tpu_custom_call.1} parent=1 // pred_check_branch
      %78 = sbr.rel (0) target = $region29
    $region28: #{tpu_custom_call.1} parent=1 // pred_region
      %79 = dma.done [#allocation6], 1024
    $region29: #{tpu_custom_call.1} parent=1 // pred_fallthru
      _
    // Predicated region
    $region30: #{tpu_custom_call.1} parent=1 // pred_check
      _
    $region31: #{tpu_custom_call.1} parent=1 // pred_check_branch
      %81 = sbr.rel (0) target = $region33
    $region32: #{tpu_custom_call.1} parent=1 // pred_region
      %82 = dma.done [#allocation6], 1024
    $region33: #{tpu_custom_call.1} parent=1 // pred_fallthru
      _
    // Predicated region
    $region34: #{tpu_custom_call.1} parent=1 // pred_check
      _
    $region35: #{tpu_custom_call.1} parent=1 // pred_check_branch
      %84 = sbr.rel (0) target = $region37
    $region36: #{tpu_custom_call.1} parent=1 // pred_region
      %85 = dma.done [#allocation9], 1024
    $region37: #{tpu_custom_call.1} parent=1 // pred_fallthru
      _
    // Predicated region
    $region38: #{tpu_custom_call.1} parent=1 // pred_check
      _
    $region39: #{tpu_custom_call.1} parent=1 // pred_check_branch
      %87 = sbr.rel (0) target = $region41
    $region40: #{tpu_custom_call.1} parent=1 // pred_region
      %88 = dma.done [#allocation9], 1024
    $region41: #{tpu_custom_call.1} parent=1 // pred_fallthru
      _
    %v90 = vld [vmem:[#allocation2] sm:$0xf]
    %v91 = vld [vmem:[#allocation2 + $0x4] sm:$0xf]
    %v92 = vld [vmem:[#allocation2 + $0x8] sm:$0xf]
    %v93 = vld [vmem:[#allocation2 + $0xc] sm:$0xf]
    %v94 = vld [vmem:[#allocation2 + $0x10] sm:$0xf]
    %v95 = vld [vmem:[#allocation2 + $0x14] sm:$0xf]
    %v96 = vld [vmem:[#allocation2 + $0x18] sm:$0xf]
    %v97 = vld [vmem:[#allocation2 + $0x1c] sm:$0xf]
    %v98 = vld [vmem:[#allocation2 + $0x20] sm:$0xf]
    %v99 = vld [vmem:[#allocation2 + $0x24] sm:$0xf]
    %v100 = vld [vmem:[#allocation2 + $0x28] sm:$0xf]
    %v101 = vld [vmem:[#allocation2 + $0x2c] sm:$0xf]
    %v102 = vld [vmem:[#allocation2 + $0x30] sm:$0xf]
    %v103 = vld [vmem:[#allocation2 + $0x34] sm:$0xf]
    %v104 = vld [vmem:[#allocation2 + $0x38] sm:$0xf]
    %v105 = vld [vmem:[#allocation2 + $0x3c] sm:$0xf]
    %v106 = vld [vmem:[#allocation5] sm:$0xf]
    %v107 = vld [vmem:[#allocation5 + $0x4] sm:$0xf]
    %v108 = vld [vmem:[#allocation5 + $0x8] sm:$0xf]
    %v109 = vld [vmem:[#allocation5 + $0xc] sm:$0xf]
    %v110 = vld [vmem:[#allocation5 + $0x10] sm:$0xf]
    %v111 = vld [vmem:[#allocation5 + $0x14] sm:$0xf]
    %v112 = vld [vmem:[#allocation5 + $0x18] sm:$0xf]
    %v113 = vld [vmem:[#allocation5 + $0x1c] sm:$0xf]
    %v114 = vld [vmem:[#allocation5 + $0x20] sm:$0xf]
    %v115 = vld [vmem:[#allocation5 + $0x24] sm:$0xf]
    %v116 = vld [vmem:[#allocation5 + $0x28] sm:$0xf]
    %v117 = vld [vmem:[#allocation5 + $0x2c] sm:$0xf]
    %v118 = vld [vmem:[#allocation5 + $0x30] sm:$0xf]
    %v119 = vld [vmem:[#allocation5 + $0x34] sm:$0xf]
    %v120 = vld [vmem:[#allocation5 + $0x38] sm:$0xf]
    %v121 = vld [vmem:[#allocation5 + $0x3c] sm:$0xf]
    %v122 = vld [vmem:[#allocation7] sm:$0xf]
    %v123 = vld [vmem:[#allocation7 + $0x4] sm:$0xf]
    %v124 = vld [vmem:[#allocation7 + $0x8] sm:$0xf]
    %v125 = vld [vmem:[#allocation7 + $0xc] sm:$0xf]
    %v126 = vld [vmem:[#allocation7 + $0x10] sm:$0xf]
    %v127 = vld [vmem:[#allocation7 + $0x14] sm:$0xf]
    %v128 = vld [vmem:[#allocation7 + $0x18] sm:$0xf]
    %v129 = vld [vmem:[#allocation7 + $0x1c] sm:$0xf]
    %v130 = vld [vmem:[#allocation7 + $0x20] sm:$0xf]
    %v131 = vld [vmem:[#allocation7 + $0x24] sm:$0xf]
    %v132 = vld [vmem:[#allocation7 + $0x28] sm:$0xf]
    %v133 = vld [vmem:[#allocation7 + $0x2c] sm:$0xf]
    %v134 = vld [vmem:[#allocation7 + $0x30] sm:$0xf]
    %v135 = vld [vmem:[#allocation7 + $0x34] sm:$0xf]
    %v136 = vld [vmem:[#allocation7 + $0x38] sm:$0xf]
    %v137 = vld [vmem:[#allocation7 + $0x3c] sm:$0xf]
    %v154 = vunpack.c.l.b16 %v90
    %v155 = vunpack.c.l.b16 %v91
    %v156 = vunpack.c.l.b16 %v92
    %v157 = vunpack.c.l.b16 %v93
    %v158 = vunpack.c.l.b16 %v94
    %v159 = vunpack.c.l.b16 %v95
    %v160 = vunpack.c.l.b16 %v96
    %v161 = vunpack.c.l.b16 %v97
    %v162 = vunpack.c.l.b16 %v98
    %v163 = vunpack.c.l.b16 %v99
    %v164 = vunpack.c.l.b16 %v100
    %v165 = vunpack.c.l.b16 %v101
    %v166 = vunpack.c.l.b16 %v102
    %v167 = vunpack.c.l.b16 %v103
    %v168 = vunpack.c.l.b16 %v104
    %v169 = vunpack.c.l.b16 %v105
    %v170 = vpack.c.b16 %v155, %v154
    %v171 = vpack.c.b16 %v157, %v156
    %v172 = vpack.c.b16 %v159, %v158
    %v173 = vpack.c.b16 %v161, %v160
    %v174 = vpack.c.b16 %v163, %v162
    %v175 = vpack.c.b16 %v165, %v164
    %v176 = vpack.c.b16 %v167, %v166
    %v177 = vpack.c.b16 %v169, %v168
    %v202 = vunpack.c.l.b16 %v106
    %v203 = vunpack.c.l.b16 %v107
    %v204 = vunpack.c.l.b16 %v108
    %v205 = vunpack.c.l.b16 %v109
    %v206 = vunpack.c.l.b16 %v110
    %v207 = vunpack.c.l.b16 %v111
    %v208 = vunpack.c.l.b16 %v112
    %v209 = vunpack.c.l.b16 %v113
    %v210 = vunpack.c.l.b16 %v114
    %v211 = vunpack.c.l.b16 %v115
    %v212 = vunpack.c.l.b16 %v116
    %v213 = vunpack.c.l.b16 %v117
    %v214 = vunpack.c.l.b16 %v118
    %v215 = vunpack.c.l.b16 %v119
    %v216 = vunpack.c.l.b16 %v120
    %v217 = vunpack.c.l.b16 %v121
    %v218 = vpack.c.b16 %v203, %v202
    %v219 = vpack.c.b16 %v205, %v204
    %v220 = vpack.c.b16 %v207, %v206
    %v221 = vpack.c.b16 %v209, %v208
    %v222 = vpack.c.b16 %v211, %v210
    %v223 = vpack.c.b16 %v213, %v212
    %v224 = vpack.c.b16 %v215, %v214
    %v225 = vpack.c.b16 %v217, %v216
    %234 = vmatprep.subr.bf16.mxu0 0
    %235 = vmatpush1.bf16.msra.mxu0 %v225
    %236 = vmatprep.subr.bf16.mxu0 0
    %237 = vmatpush1.bf16.msra.mxu0 %v224
    %238 = vmatprep.subr.bf16.mxu0 0
    %239 = vmatpush1.bf16.msra.mxu0 %v223
    %240 = vmatprep.subr.bf16.mxu0 0
    %241 = vmatpush1.bf16.msra.mxu0 %v222
    %242 = vmatprep.subr.bf16.mxu0 0
    %243 = vmatpush1.bf16.msra.mxu0 %v221
    %244 = vmatprep.subr.bf16.mxu0 0
    %245 = vmatpush1.bf16.msra.mxu0 %v220
    %246 = vmatprep.subr.bf16.mxu0 0
    %247 = vmatpush1.bf16.msra.mxu0 %v219
    %248 = vmatprep.subr.bf16.mxu0 0
    %249 = vmatpush1.bf16.msra.mxu0 %v218
    %250 = vmatprep.subr.bf16.mxu0 0
    %251 = vmatpush2.bf16.msra.mxu0 0
    %252 = vmatprep.subr.bf16.mxu0 0
    %253 = vmatpush2.bf16.msra.mxu0 0
    %254 = vmatprep.subr.bf16.mxu0 0
    %255 = vmatpush2.bf16.msra.mxu0 0
    %256 = vmatprep.subr.bf16.mxu0 0
    %257 = vmatpush2.bf16.msra.mxu0 0
    %258 = vmatprep.subr.bf16.mxu0 0
    %259 = vmatpush2.bf16.msra.mxu0 0
    %260 = vmatprep.subr.bf16.mxu0 0
    %261 = vmatpush2.bf16.msra.mxu0 0
    %262 = vmatprep.subr.bf16.mxu0 0
    %263 = vmatpush2.bf16.msra.mxu0 0
    %264 = vmatprep.subr.bf16.mxu0 0
    %265 = vmatpush2.bf16.msra.mxu0 0
    %266 = vmatprep.mubr.bf16.mxu0 0
    %267 = vmatmul.mubr.bf16.gmra.mxu0 %v170
    %v268 = vpop.f32.mrf.mxu0
    %v269 = vadd.f32 0.0, %v268
    %v270 = vpop.f32.mrf.mxu0
    %v271 = vpop.f32.mrf.mxu0
    %v272 = vadd.f32 0.0, %v271
    %v273 = vpop.f32.mrf.mxu0
    %274 = vmatprep.mubr.bf16.mxu0 0
    %275 = vmatmul.mubr.bf16.gmra.mxu0 %v171
    %v276 = vpop.f32.mrf.mxu0
    %v277 = vadd.f32 0.0, %v276
    %v278 = vpop.f32.mrf.mxu0
    %v279 = vpop.f32.mrf.mxu0
    %v280 = vadd.f32 0.0, %v279
    %v281 = vpop.f32.mrf.mxu0
    %282 = vmatprep.mubr.bf16.mxu0 0
    %283 = vmatmul.mubr.bf16.gmra.mxu0 %v172
    %v284 = vpop.f32.mrf.mxu0
    %v285 = vadd.f32 0.0, %v284
    %v286 = vpop.f32.mrf.mxu0
    %v287 = vpop.f32.mrf.mxu0
    %v288 = vadd.f32 0.0, %v287
    %v289 = vpop.f32.mrf.mxu0
    %290 = vmatprep.mubr.bf16.mxu0 0
    %291 = vmatmul.mubr.bf16.gmra.mxu0 %v173
    %v292 = vpop.f32.mrf.mxu0
    %v293 = vadd.f32 0.0, %v292
    %v294 = vpop.f32.mrf.mxu0
    %v295 = vpop.f32.mrf.mxu0
    %v296 = vadd.f32 0.0, %v295
    %v297 = vpop.f32.mrf.mxu0
    %298 = vmatprep.mubr.bf16.mxu0 0
    %299 = vmatmul.mubr.bf16.gmra.mxu0 %v174
    %v300 = vpop.f32.mrf.mxu0
    %v301 = vadd.f32 0.0, %v300
    %v302 = vpop.f32.mrf.mxu0
    %v303 = vpop.f32.mrf.mxu0
    %v304 = vadd.f32 0.0, %v303
    %v305 = vpop.f32.mrf.mxu0
    %306 = vmatprep.mubr.bf16.mxu0 0
    %307 = vmatmul.mubr.bf16.gmra.mxu0 %v175
    %v308 = vpop.f32.mrf.mxu0
    %v309 = vadd.f32 0.0, %v308
    %v310 = vpop.f32.mrf.mxu0
    %v311 = vpop.f32.mrf.mxu0
    %v312 = vadd.f32 0.0, %v311
    %v313 = vpop.f32.mrf.mxu0
    %314 = vmatprep.mubr.bf16.mxu0 0
    %315 = vmatmul.mubr.bf16.gmra.mxu0 %v176
    %v316 = vpop.f32.mrf.mxu0
    %v317 = vadd.f32 0.0, %v316
    %v318 = vpop.f32.mrf.mxu0
    %v319 = vpop.f32.mrf.mxu0
    %v320 = vadd.f32 0.0, %v319
    %v321 = vpop.f32.mrf.mxu0
    %322 = vmatprep.mubr.bf16.mxu0 0
    %323 = vmatmul.mubr.bf16.gmra.mxu0 %v177
    %v324 = vpop.f32.mrf.mxu0
    %v325 = vadd.f32 0.0, %v324
    %v326 = vpop.f32.mrf.mxu0
    %v327 = vpop.f32.mrf.mxu0
    %v328 = vadd.f32 0.0, %v327
    %v329 = vpop.f32.mrf.mxu0
    %330 = vdwg.mxu0
    %v331 = vpack.c.bf16 %v272, %v269
    %v332 = vpack.c.bf16 %v280, %v277
    %v333 = vpack.c.bf16 %v288, %v285
    %v334 = vpack.c.bf16 %v296, %v293
    %v335 = vpack.c.bf16 %v304, %v301
    %v336 = vpack.c.bf16 %v312, %v309
    %v337 = vpack.c.bf16 %v320, %v317
    %v338 = vpack.c.bf16 %v328, %v325
    %v355 = vunpack.c.l.b16 %v122
    %v356 = vunpack.c.l.b16 %v123
    %v357 = vunpack.c.l.b16 %v124
    %v358 = vunpack.c.l.b16 %v125
    %v359 = vunpack.c.l.b16 %v126
    %v360 = vunpack.c.l.b16 %v127
    %v361 = vunpack.c.l.b16 %v128
    %v362 = vunpack.c.l.b16 %v129
    %v363 = vunpack.c.l.b16 %v130
    %v364 = vunpack.c.l.b16 %v131
    %v365 = vunpack.c.l.b16 %v132
    %v366 = vunpack.c.l.b16 %v133
    %v367 = vunpack.c.l.b16 %v134
    %v368 = vunpack.c.l.b16 %v135
    %v369 = vunpack.c.l.b16 %v136
    %v370 = vunpack.c.l.b16 %v137
    %v371 = vpack.c.b16 %v356, %v355
    %v372 = vpack.c.b16 %v358, %v357
    %v373 = vpack.c.b16 %v360, %v359
    %v374 = vpack.c.b16 %v362, %v361
    %v375 = vpack.c.b16 %v364, %v363
    %v376 = vpack.c.b16 %v366, %v365
    %v377 = vpack.c.b16 %v368, %v367
    %v378 = vpack.c.b16 %v370, %v369
    %387 = vmatprep.subr.bf16.mxu0 0
    %388 = vmatpush1.bf16.msra.mxu0 %v378
    %389 = vmatprep.subr.bf16.mxu0 0
    %390 = vmatpush1.bf16.msra.mxu0 %v377
    %391 = vmatprep.subr.bf16.mxu0 0
    %392 = vmatpush1.bf16.msra.mxu0 %v376
    %393 = vmatprep.subr.bf16.mxu0 0
    %394 = vmatpush1.bf16.msra.mxu0 %v375
    %395 = vmatprep.subr.bf16.mxu0 0
    %396 = vmatpush1.bf16.msra.mxu0 %v374
    %397 = vmatprep.subr.bf16.mxu0 0
    %398 = vmatpush1.bf16.msra.mxu0 %v373
    %399 = vmatprep.subr.bf16.mxu0 0
    %400 = vmatpush1.bf16.msra.mxu0 %v372
    %401 = vmatprep.subr.bf16.mxu0 0
    %402 = vmatpush1.bf16.msra.mxu0 %v371
    %403 = vmatprep.subr.bf16.mxu0 0
    %404 = vmatpush2.bf16.msra.mxu0 0
    %405 = vmatprep.subr.bf16.mxu0 0
    %406 = vmatpush2.bf16.msra.mxu0 0
    %407 = vmatprep.subr.bf16.mxu0 0
    %408 = vmatpush2.bf16.msra.mxu0 0
    %409 = vmatprep.subr.bf16.mxu0 0
    %410 = vmatpush2.bf16.msra.mxu0 0
    %411 = vmatprep.subr.bf16.mxu0 0
    %412 = vmatpush2.bf16.msra.mxu0 0
    %413 = vmatprep.subr.bf16.mxu0 0
    %414 = vmatpush2.bf16.msra.mxu0 0
    %415 = vmatprep.subr.bf16.mxu0 0
    %416 = vmatpush2.bf16.msra.mxu0 0
    %417 = vmatprep.subr.bf16.mxu0 0
    %418 = vmatpush2.bf16.msra.mxu0 0
    %419 = vmatprep.mubr.bf16.mxu0 0
    %420 = vmatmul.mubr.bf16.gmra.mxu0 %v331
    %v421 = vpop.f32.mrf.mxu0
    %v422 = vadd.f32 0.0, %v421
    %v423 = vpop.f32.mrf.mxu0
    %v424 = vpop.f32.mrf.mxu0
    %v425 = vadd.f32 0.0, %v424
    %v426 = vpop.f32.mrf.mxu0
    %427 = vmatprep.mubr.bf16.mxu0 0
    %428 = vmatmul.mubr.bf16.gmra.mxu0 %v332
    %v429 = vpop.f32.mrf.mxu0
    %v430 = vadd.f32 0.0, %v429
    %v431 = vpop.f32.mrf.mxu0
    %v432 = vpop.f32.mrf.mxu0
    %v433 = vadd.f32 0.0, %v432
    %v434 = vpop.f32.mrf.mxu0
    %435 = vmatprep.mubr.bf16.mxu0 0
    %436 = vmatmul.mubr.bf16.gmra.mxu0 %v333
    %v437 = vpop.f32.mrf.mxu0
    %v438 = vadd.f32 0.0, %v437
    %v439 = vpop.f32.mrf.mxu0
    %v440 = vpop.f32.mrf.mxu0
    %v441 = vadd.f32 0.0, %v440
    %v442 = vpop.f32.mrf.mxu0
    %443 = vmatprep.mubr.bf16.mxu0 0
    %444 = vmatmul.mubr.bf16.gmra.mxu0 %v334
    %v445 = vpop.f32.mrf.mxu0
    %v446 = vadd.f32 0.0, %v445
    %v447 = vpop.f32.mrf.mxu0
    %v448 = vpop.f32.mrf.mxu0
    %v449 = vadd.f32 0.0, %v448
    %v450 = vpop.f32.mrf.mxu0
    %451 = vmatprep.mubr.bf16.mxu0 0
    %452 = vmatmul.mubr.bf16.gmra.mxu0 %v335
    %v453 = vpop.f32.mrf.mxu0
    %v454 = vadd.f32 0.0, %v453
    %v455 = vpop.f32.mrf.mxu0
    %v456 = vpop.f32.mrf.mxu0
    %v457 = vadd.f32 0.0, %v456
    %v458 = vpop.f32.mrf.mxu0
    %459 = vmatprep.mubr.bf16.mxu0 0
    %460 = vmatmul.mubr.bf16.gmra.mxu0 %v336
    %v461 = vpop.f32.mrf.mxu0
    %v462 = vadd.f32 0.0, %v461
    %v463 = vpop.f32.mrf.mxu0
    %v464 = vpop.f32.mrf.mxu0
    %v465 = vadd.f32 0.0, %v464
    %v466 = vpop.f32.mrf.mxu0
    %467 = vmatprep.mubr.bf16.mxu0 0
    %468 = vmatmul.mubr.bf16.gmra.mxu0 %v337
    %v469 = vpop.f32.mrf.mxu0
    %v470 = vadd.f32 0.0, %v469
    %v471 = vpop.f32.mrf.mxu0
    %v472 = vpop.f32.mrf.mxu0
    %v473 = vadd.f32 0.0, %v472
    %v474 = vpop.f32.mrf.mxu0
    %475 = vmatprep.mubr.bf16.mxu0 0
    %476 = vmatmul.mubr.bf16.gmra.mxu0 %v338
    %v477 = vpop.f32.mrf.mxu0
    %v478 = vadd.f32 0.0, %v477
    %v479 = vpop.f32.mrf.mxu0
    %v480 = vpop.f32.mrf.mxu0
    %v481 = vadd.f32 0.0, %v480
    %v482 = vpop.f32.mrf.mxu0
    %483 = vdwg.mxu0
    %v484 = vtanh.pop %v422
    %v485 = vtanh.pop %v425
    %v486 = vtanh.pop %v430
    %v487 = vtanh.pop %v433
    %v488 = vtanh.pop %v438
    %v489 = vtanh.pop %v441
    %v490 = vtanh.pop %v446
    %v491 = vtanh.pop %v449
    %v492 = vtanh.pop %v454
    %v493 = vtanh.pop %v457
    %v494 = vtanh.pop %v462
    %v495 = vtanh.pop %v465
    %v496 = vtanh.pop %v470
    %v497 = vtanh.pop %v473
    %v498 = vtanh.pop %v478
    %v499 = vtanh.pop %v481
    %v500 = vpack.c.bf16 %v485, %v484
    %v501 = vpack.c.bf16 %v487, %v486
    %v502 = vpack.c.bf16 %v489, %v488
    %v503 = vpack.c.bf16 %v491, %v490
    %v504 = vpack.c.bf16 %v493, %v492
    %v505 = vpack.c.bf16 %v495, %v494
    %v506 = vpack.c.bf16 %v497, %v496
    %v507 = vpack.c.bf16 %v499, %v498
    %v508 = vld [vmem:[#allocation8] sm:$0xf]
    %v509 = vld [vmem:[#allocation8 + $0x4] sm:$0xf]
    %v510 = vld [vmem:[#allocation8 + $0x8] sm:$0xf]
    %v511 = vld [vmem:[#allocation8 + $0xc] sm:$0xf]
    %v512 = vld [vmem:[#allocation8 + $0x10] sm:$0xf]
    %v513 = vld [vmem:[#allocation8 + $0x14] sm:$0xf]
    %v514 = vld [vmem:[#allocation8 + $0x18] sm:$0xf]
    %v515 = vld [vmem:[#allocation8 + $0x1c] sm:$0xf]
    %v516 = vld [vmem:[#allocation8 + $0x20] sm:$0xf]
    %v517 = vld [vmem:[#allocation8 + $0x24] sm:$0xf]
    %v518 = vld [vmem:[#allocation8 + $0x28] sm:$0xf]
    %v519 = vld [vmem:[#allocation8 + $0x2c] sm:$0xf]
    %v520 = vld [vmem:[#allocation8 + $0x30] sm:$0xf]
    %v521 = vld [vmem:[#allocation8 + $0x34] sm:$0xf]
    %v522 = vld [vmem:[#allocation8 + $0x38] sm:$0xf]
    %v523 = vld [vmem:[#allocation8 + $0x3c] sm:$0xf]
    %524 = vmatprep.subr.bf16.mxu0 0
    %525 = vmatpush1.bf16.msra.mxu0 %v507
    %526 = vmatprep.subr.bf16.mxu0 0
    %527 = vmatpush1.bf16.msra.mxu0 %v506
    %528 = vmatprep.subr.bf16.mxu0 0
    %529 = vmatpush1.bf16.msra.mxu0 %v505
    %530 = vmatprep.subr.bf16.mxu0 0
    %531 = vmatpush1.bf16.msra.mxu0 %v504
    %532 = vmatprep.subr.bf16.mxu0 0
    %533 = vmatpush1.bf16.msra.mxu0 %v503
    %534 = vmatprep.subr.bf16.mxu0 0
    %535 = vmatpush1.bf16.msra.mxu0 %v502
    %536 = vmatprep.subr.bf16.mxu0 0
    %537 = vmatpush1.bf16.msra.mxu0 %v501
    %538 = vmatprep.subr.bf16.mxu0 0
    %539 = vmatpush1.bf16.msra.mxu0 %v500
    %540 = vmatprep.subr.bf16.mxu0 0
    %541 = vmatpush2.bf16.msra.mxu0 0
    %542 = vmatprep.subr.bf16.mxu0 0
    %543 = vmatpush2.bf16.msra.mxu0 0
    %544 = vmatprep.subr.bf16.mxu0 0
    %545 = vmatpush2.bf16.msra.mxu0 0
    %546 = vmatprep.subr.bf16.mxu0 0
    %547 = vmatpush2.bf16.msra.mxu0 0
    %548 = vmatprep.subr.bf16.mxu0 0
    %549 = vmatpush2.bf16.msra.mxu0 0
    %550 = vmatprep.subr.bf16.mxu0 0
    %551 = vmatpush2.bf16.msra.mxu0 0
    %552 = vmatprep.subr.bf16.mxu0 0
    %553 = vmatpush2.bf16.msra.mxu0 0
    %554 = vmatprep.subr.bf16.mxu0 0
    %555 = vmatpush2.bf16.msra.mxu0 0
    %556 = vmatprep.mubr.bf16.mxu0 0
    %557 = vmatmul.mubr.bf16.gmra.mxu0 %v170
    %v558 = vpop.f32.mrf.mxu0
    %v559 = vadd.f32 0.0, %v558
    %v560 = vpop.f32.mrf.mxu0
    %v561 = vpop.f32.mrf.mxu0
    %v562 = vadd.f32 0.0, %v561
    %v563 = vpop.f32.mrf.mxu0
    %564 = vmatprep.mubr.bf16.mxu0 0
    %565 = vmatmul.mubr.bf16.gmra.mxu0 %v171
    %v566 = vpop.f32.mrf.mxu0
    %v567 = vadd.f32 0.0, %v566
    %v568 = vpop.f32.mrf.mxu0
    %v569 = vpop.f32.mrf.mxu0
    %v570 = vadd.f32 0.0, %v569
    %v571 = vpop.f32.mrf.mxu0
    %572 = vmatprep.mubr.bf16.mxu0 0
    %573 = vmatmul.mubr.bf16.gmra.mxu0 %v172
    %v574 = vpop.f32.mrf.mxu0
    %v575 = vadd.f32 0.0, %v574
    %v576 = vpop.f32.mrf.mxu0
    %v577 = vpop.f32.mrf.mxu0
    %v578 = vadd.f32 0.0, %v577
    %v579 = vpop.f32.mrf.mxu0
    %580 = vmatprep.mubr.bf16.mxu0 0
    %581 = vmatmul.mubr.bf16.gmra.mxu0 %v173
    %v582 = vpop.f32.mrf.mxu0
    %v583 = vadd.f32 0.0, %v582
    %v584 = vpop.f32.mrf.mxu0
    %v585 = vpop.f32.mrf.mxu0
    %v586 = vadd.f32 0.0, %v585
    %v587 = vpop.f32.mrf.mxu0
    %588 = vmatprep.mubr.bf16.mxu0 0
    %589 = vmatmul.mubr.bf16.gmra.mxu0 %v174
    %v590 = vpop.f32.mrf.mxu0
    %v591 = vadd.f32 0.0, %v590
    %v592 = vpop.f32.mrf.mxu0
    %v593 = vpop.f32.mrf.mxu0
    %v594 = vadd.f32 0.0, %v593
    %v595 = vpop.f32.mrf.mxu0
    %596 = vmatprep.mubr.bf16.mxu0 0
    %597 = vmatmul.mubr.bf16.gmra.mxu0 %v175
    %v598 = vpop.f32.mrf.mxu0
    %v599 = vadd.f32 0.0, %v598
    %v600 = vpop.f32.mrf.mxu0
    %v601 = vpop.f32.mrf.mxu0
    %v602 = vadd.f32 0.0, %v601
    %v603 = vpop.f32.mrf.mxu0
    %604 = vmatprep.mubr.bf16.mxu0 0
    %605 = vmatmul.mubr.bf16.gmra.mxu0 %v176
    %v606 = vpop.f32.mrf.mxu0
    %v607 = vadd.f32 0.0, %v606
    %v608 = vpop.f32.mrf.mxu0
    %v609 = vpop.f32.mrf.mxu0
    %v610 = vadd.f32 0.0, %v609
    %v611 = vpop.f32.mrf.mxu0
    %612 = vmatprep.mubr.bf16.mxu0 0
    %613 = vmatmul.mubr.bf16.gmra.mxu0 %v177
    %v614 = vpop.f32.mrf.mxu0
    %v615 = vadd.f32 0.0, %v614
    %v616 = vpop.f32.mrf.mxu0
    %v617 = vpop.f32.mrf.mxu0
    %v618 = vadd.f32 0.0, %v617
    %v619 = vpop.f32.mrf.mxu0
    %620 = vdwg.mxu0
    %v621 = vpack.c.bf16 %v562, %v559
    %v622 = vpack.c.bf16 %v570, %v567
    %v623 = vpack.c.bf16 %v578, %v575
    %v624 = vpack.c.bf16 %v586, %v583
    %v625 = vpack.c.bf16 %v594, %v591
    %v626 = vpack.c.bf16 %v602, %v599
    %v627 = vpack.c.bf16 %v610, %v607
    %v628 = vpack.c.bf16 %v618, %v615
    %v645 = vunpack.c.l.b16 %v508
    %v646 = vunpack.c.l.b16 %v509
    %v647 = vunpack.c.l.b16 %v510
    %v648 = vunpack.c.l.b16 %v511
    %v649 = vunpack.c.l.b16 %v512
    %v650 = vunpack.c.l.b16 %v513
    %v651 = vunpack.c.l.b16 %v514
    %v652 = vunpack.c.l.b16 %v515
    %v653 = vunpack.c.l.b16 %v516
    %v654 = vunpack.c.l.b16 %v517
    %v655 = vunpack.c.l.b16 %v518
    %v656 = vunpack.c.l.b16 %v519
    %v657 = vunpack.c.l.b16 %v520
    %v658 = vunpack.c.l.b16 %v521
    %v659 = vunpack.c.l.b16 %v522
    %v660 = vunpack.c.l.b16 %v523
    %v661 = vpack.c.b16 %v646, %v645
    %v662 = vpack.c.b16 %v648, %v647
    %v663 = vpack.c.b16 %v650, %v649
    %v664 = vpack.c.b16 %v652, %v651
    %v665 = vpack.c.b16 %v654, %v653
    %v666 = vpack.c.b16 %v656, %v655
    %v667 = vpack.c.b16 %v658, %v657
    %v668 = vpack.c.b16 %v660, %v659
    %677 = vmatprep.subr.bf16.mxu0 0
    %678 = vmatpush1.bf16.msra.mxu0 %v668
    %679 = vmatprep.subr.bf16.mxu0 0
    %680 = vmatpush1.bf16.msra.mxu0 %v667
    %681 = vmatprep.subr.bf16.mxu0 0
    %682 = vmatpush1.bf16.msra.mxu0 %v666
    %683 = vmatprep.subr.bf16.mxu0 0
    %684 = vmatpush1.bf16.msra.mxu0 %v665
    %685 = vmatprep.subr.bf16.mxu0 0
    %686 = vmatpush1.bf16.msra.mxu0 %v664
    %687 = vmatprep.subr.bf16.mxu0 0
    %688 = vmatpush1.bf16.msra.mxu0 %v663
    %689 = vmatprep.subr.bf16.mxu0 0
    %690 = vmatpush1.bf16.msra.mxu0 %v662
    %691 = vmatprep.subr.bf16.mxu0 0
    %692 = vmatpush1.bf16.msra.mxu0 %v661
    %693 = vmatprep.subr.bf16.mxu0 0
    %694 = vmatpush2.bf16.msra.mxu0 0
    %695 = vmatprep.subr.bf16.mxu0 0
    %696 = vmatpush2.bf16.msra.mxu0 0
    %697 = vmatprep.subr.bf16.mxu0 0
    %698 = vmatpush2.bf16.msra.mxu0 0
    %699 = vmatprep.subr.bf16.mxu0 0
    %700 = vmatpush2.bf16.msra.mxu0 0
    %701 = vmatprep.subr.bf16.mxu0 0
    %702 = vmatpush2.bf16.msra.mxu0 0
    %703 = vmatprep.subr.bf16.mxu0 0
    %704 = vmatpush2.bf16.msra.mxu0 0
    %705 = vmatprep.subr.bf16.mxu0 0
    %706 = vmatpush2.bf16.msra.mxu0 0
    %707 = vmatprep.subr.bf16.mxu0 0
    %708 = vmatpush2.bf16.msra.mxu0 0
    %709 = vmatprep.mubr.bf16.mxu0 0
    %710 = vmatmul.mubr.bf16.gmra.mxu0 %v621
    %v711 = vpop.f32.mrf.mxu0
    %v712 = vadd.f32 0.0, %v711
    %v713 = vpop.f32.mrf.mxu0
    %v714 = vpop.f32.mrf.mxu0
    %v715 = vadd.f32 0.0, %v714
    %v716 = vpop.f32.mrf.mxu0
    %717 = vmatprep.mubr.bf16.mxu0 0
    %718 = vmatmul.mubr.bf16.gmra.mxu0 %v622
    %v719 = vpop.f32.mrf.mxu0
    %v720 = vadd.f32 0.0, %v719
    %v721 = vpop.f32.mrf.mxu0
    %v722 = vpop.f32.mrf.mxu0
    %v723 = vadd.f32 0.0, %v722
    %v724 = vpop.f32.mrf.mxu0
    %725 = vmatprep.mubr.bf16.mxu0 0
    %726 = vmatmul.mubr.bf16.gmra.mxu0 %v623
    %v727 = vpop.f32.mrf.mxu0
    %v728 = vadd.f32 0.0, %v727
    %v729 = vpop.f32.mrf.mxu0
    %v730 = vpop.f32.mrf.mxu0
    %v731 = vadd.f32 0.0, %v730
    %v732 = vpop.f32.mrf.mxu0
    %733 = vmatprep.mubr.bf16.mxu0 0
    %734 = vmatmul.mubr.bf16.gmra.mxu0 %v624
    %v735 = vpop.f32.mrf.mxu0
    %v736 = vadd.f32 0.0, %v735
    %v737 = vpop.f32.mrf.mxu0
    %v738 = vpop.f32.mrf.mxu0
    %v739 = vadd.f32 0.0, %v738
    %v740 = vpop.f32.mrf.mxu0
    %741 = vmatprep.mubr.bf16.mxu0 0
    %742 = vmatmul.mubr.bf16.gmra.mxu0 %v625
    %v743 = vpop.f32.mrf.mxu0
    %v744 = vadd.f32 0.0, %v743
    %v745 = vpop.f32.mrf.mxu0
    %v746 = vpop.f32.mrf.mxu0
    %v747 = vadd.f32 0.0, %v746
    %v748 = vpop.f32.mrf.mxu0
    %749 = vmatprep.mubr.bf16.mxu0 0
    %750 = vmatmul.mubr.bf16.gmra.mxu0 %v626
    %v751 = vpop.f32.mrf.mxu0
    %v752 = vadd.f32 0.0, %v751
    %v753 = vpop.f32.mrf.mxu0
    %v754 = vpop.f32.mrf.mxu0
    %v755 = vadd.f32 0.0, %v754
    %v756 = vpop.f32.mrf.mxu0
    %757 = vmatprep.mubr.bf16.mxu0 0
    %758 = vmatmul.mubr.bf16.gmra.mxu0 %v627
    %v759 = vpop.f32.mrf.mxu0
    %v760 = vadd.f32 0.0, %v759
    %v761 = vpop.f32.mrf.mxu0
    %v762 = vpop.f32.mrf.mxu0
    %v763 = vadd.f32 0.0, %v762
    %v764 = vpop.f32.mrf.mxu0
    %765 = vmatprep.mubr.bf16.mxu0 0
    %766 = vmatmul.mubr.bf16.gmra.mxu0 %v628
    %v767 = vpop.f32.mrf.mxu0
    %v768 = vadd.f32 0.0, %v767
    %v769 = vpop.f32.mrf.mxu0
    %v770 = vpop.f32.mrf.mxu0
    %v771 = vadd.f32 0.0, %v770
    %v772 = vpop.f32.mrf.mxu0
    %773 = vdwg.mxu0
    %v774 = vtanh.pop %v712
    %v775 = vtanh.pop %v715
    %v776 = vtanh.pop %v720
    %v777 = vtanh.pop %v723
    %v778 = vtanh.pop %v728
    %v779 = vtanh.pop %v731
    %v780 = vtanh.pop %v736
    %v781 = vtanh.pop %v739
    %v782 = vtanh.pop %v744
    %v783 = vtanh.pop %v747
    %v784 = vtanh.pop %v752
    %v785 = vtanh.pop %v755
    %v786 = vtanh.pop %v760
    %v787 = vtanh.pop %v763
    %v788 = vtanh.pop %v768
    %v789 = vtanh.pop %v771
    %v790 = vpack.c.bf16 %v775, %v774
    %v791 = vpack.c.bf16 %v777, %v776
    %v792 = vpack.c.bf16 %v779, %v778
    %v793 = vpack.c.bf16 %v781, %v780
    %v794 = vpack.c.bf16 %v783, %v782
    %v795 = vpack.c.bf16 %v785, %v784
    %v796 = vpack.c.bf16 %v787, %v786
    %v797 = vpack.c.bf16 %v789, %v788
    %v798 = vld [vmem:[#allocation10] sm:$0xf]
    %v799 = vld [vmem:[#allocation10 + $0x4] sm:$0xf]
    %v800 = vld [vmem:[#allocation10 + $0x8] sm:$0xf]
    %v801 = vld [vmem:[#allocation10 + $0xc] sm:$0xf]
    %v802 = vld [vmem:[#allocation10 + $0x10] sm:$0xf]
    %v803 = vld [vmem:[#allocation10 + $0x14] sm:$0xf]
    %v804 = vld [vmem:[#allocation10 + $0x18] sm:$0xf]
    %v805 = vld [vmem:[#allocation10 + $0x1c] sm:$0xf]
    %v806 = vld [vmem:[#allocation10 + $0x20] sm:$0xf]
    %v807 = vld [vmem:[#allocation10 + $0x24] sm:$0xf]
    %v808 = vld [vmem:[#allocation10 + $0x28] sm:$0xf]
    %v809 = vld [vmem:[#allocation10 + $0x2c] sm:$0xf]
    %v810 = vld [vmem:[#allocation10 + $0x30] sm:$0xf]
    %v811 = vld [vmem:[#allocation10 + $0x34] sm:$0xf]
    %v812 = vld [vmem:[#allocation10 + $0x38] sm:$0xf]
    %v813 = vld [vmem:[#allocation10 + $0x3c] sm:$0xf]
    %814 = vmatprep.subr.bf16.mxu0 0
    %815 = vmatpush1.bf16.msra.mxu0 %v797
    %816 = vmatprep.subr.bf16.mxu0 0
    %817 = vmatpush1.bf16.msra.mxu0 %v796
    %818 = vmatprep.subr.bf16.mxu0 0
    %819 = vmatpush1.bf16.msra.mxu0 %v795
    %820 = vmatprep.subr.bf16.mxu0 0
    %821 = vmatpush1.bf16.msra.mxu0 %v794
    %822 = vmatprep.subr.bf16.mxu0 0
    %823 = vmatpush1.bf16.msra.mxu0 %v793
    %824 = vmatprep.subr.bf16.mxu0 0
    %825 = vmatpush1.bf16.msra.mxu0 %v792
    %826 = vmatprep.subr.bf16.mxu0 0
    %827 = vmatpush1.bf16.msra.mxu0 %v791
    %828 = vmatprep.subr.bf16.mxu0 0
    %829 = vmatpush1.bf16.msra.mxu0 %v790
    %830 = vmatprep.subr.bf16.mxu0 0
    %831 = vmatpush2.bf16.msra.mxu0 0
    %832 = vmatprep.subr.bf16.mxu0 0
    %833 = vmatpush2.bf16.msra.mxu0 0
    %834 = vmatprep.subr.bf16.mxu0 0
    %835 = vmatpush2.bf16.msra.mxu0 0
    %836 = vmatprep.subr.bf16.mxu0 0
    %837 = vmatpush2.bf16.msra.mxu0 0
    %838 = vmatprep.subr.bf16.mxu0 0
    %839 = vmatpush2.bf16.msra.mxu0 0
    %840 = vmatprep.subr.bf16.mxu0 0
    %841 = vmatpush2.bf16.msra.mxu0 0
    %842 = vmatprep.subr.bf16.mxu0 0
    %843 = vmatpush2.bf16.msra.mxu0 0
    %844 = vmatprep.subr.bf16.mxu0 0
    %845 = vmatpush2.bf16.msra.mxu0 0
    %846 = vmatprep.mubr.bf16.mxu0 0
    %847 = vmatmul.mubr.bf16.gmra.mxu0 %v170
    %v848 = vpop.f32.mrf.mxu0
    %v849 = vadd.f32 0.0, %v848
    %v850 = vpop.f32.mrf.mxu0
    %v851 = vpop.f32.mrf.mxu0
    %v852 = vadd.f32 0.0, %v851
    %v853 = vpop.f32.mrf.mxu0
    %854 = vmatprep.mubr.bf16.mxu0 0
    %855 = vmatmul.mubr.bf16.gmra.mxu0 %v171
    %v856 = vpop.f32.mrf.mxu0
    %v857 = vadd.f32 0.0, %v856
    %v858 = vpop.f32.mrf.mxu0
    %v859 = vpop.f32.mrf.mxu0
    %v860 = vadd.f32 0.0, %v859
    %v861 = vpop.f32.mrf.mxu0
    %862 = vmatprep.mubr.bf16.mxu0 0
    %863 = vmatmul.mubr.bf16.gmra.mxu0 %v172
    %v864 = vpop.f32.mrf.mxu0
    %v865 = vadd.f32 0.0, %v864
    %v866 = vpop.f32.mrf.mxu0
    %v867 = vpop.f32.mrf.mxu0
    %v868 = vadd.f32 0.0, %v867
    %v869 = vpop.f32.mrf.mxu0
    %870 = vmatprep.mubr.bf16.mxu0 0
    %871 = vmatmul.mubr.bf16.gmra.mxu0 %v173
    %v872 = vpop.f32.mrf.mxu0
    %v873 = vadd.f32 0.0, %v872
    %v874 = vpop.f32.mrf.mxu0
    %v875 = vpop.f32.mrf.mxu0
    %v876 = vadd.f32 0.0, %v875
    %v877 = vpop.f32.mrf.mxu0
    %878 = vmatprep.mubr.bf16.mxu0 0
    %879 = vmatmul.mubr.bf16.gmra.mxu0 %v174
    %v880 = vpop.f32.mrf.mxu0
    %v881 = vadd.f32 0.0, %v880
    %v882 = vpop.f32.mrf.mxu0
    %v883 = vpop.f32.mrf.mxu0
    %v884 = vadd.f32 0.0, %v883
    %v885 = vpop.f32.mrf.mxu0
    %886 = vmatprep.mubr.bf16.mxu0 0
    %887 = vmatmul.mubr.bf16.gmra.mxu0 %v175
    %v888 = vpop.f32.mrf.mxu0
    %v889 = vadd.f32 0.0, %v888
    %v890 = vpop.f32.mrf.mxu0
    %v891 = vpop.f32.mrf.mxu0
    %v892 = vadd.f32 0.0, %v891
    %v893 = vpop.f32.mrf.mxu0
    %894 = vmatprep.mubr.bf16.mxu0 0
    %895 = vmatmul.mubr.bf16.gmra.mxu0 %v176
    %v896 = vpop.f32.mrf.mxu0
    %v897 = vadd.f32 0.0, %v896
    %v898 = vpop.f32.mrf.mxu0
    %v899 = vpop.f32.mrf.mxu0
    %v900 = vadd.f32 0.0, %v899
    %v901 = vpop.f32.mrf.mxu0
    %902 = vmatprep.mubr.bf16.mxu0 0
    %903 = vmatmul.mubr.bf16.gmra.mxu0 %v177
    %v904 = vpop.f32.mrf.mxu0
    %v905 = vadd.f32 0.0, %v904
    %v906 = vpop.f32.mrf.mxu0
    %v907 = vpop.f32.mrf.mxu0
    %v908 = vadd.f32 0.0, %v907
    %v909 = vpop.f32.mrf.mxu0
    %910 = vdwg.mxu0
    %v911 = vpack.c.bf16 %v852, %v849
    %v912 = vpack.c.bf16 %v860, %v857
    %v913 = vpack.c.bf16 %v868, %v865
    %v914 = vpack.c.bf16 %v876, %v873
    %v915 = vpack.c.bf16 %v884, %v881
    %v916 = vpack.c.bf16 %v892, %v889
    %v917 = vpack.c.bf16 %v900, %v897
    %v918 = vpack.c.bf16 %v908, %v905
    %v935 = vunpack.c.l.b16 %v798
    %v936 = vunpack.c.l.b16 %v799
    %v937 = vunpack.c.l.b16 %v800
    %v938 = vunpack.c.l.b16 %v801
    %v939 = vunpack.c.l.b16 %v802
    %v940 = vunpack.c.l.b16 %v803
    %v941 = vunpack.c.l.b16 %v804
    %v942 = vunpack.c.l.b16 %v805
    %v943 = vunpack.c.l.b16 %v806
    %v944 = vunpack.c.l.b16 %v807
    %v945 = vunpack.c.l.b16 %v808
    %v946 = vunpack.c.l.b16 %v809
    %v947 = vunpack.c.l.b16 %v810
    %v948 = vunpack.c.l.b16 %v811
    %v949 = vunpack.c.l.b16 %v812
    %v950 = vunpack.c.l.b16 %v813
    %v951 = vpack.c.b16 %v936, %v935
    %v952 = vpack.c.b16 %v938, %v937
    %v953 = vpack.c.b16 %v940, %v939
    %v954 = vpack.c.b16 %v942, %v941
    %v955 = vpack.c.b16 %v944, %v943
    %v956 = vpack.c.b16 %v946, %v945
    %v957 = vpack.c.b16 %v948, %v947
    %v958 = vpack.c.b16 %v950, %v949
    %967 = vmatprep.subr.bf16.mxu0 0
    %968 = vmatpush1.bf16.msra.mxu0 %v958
    %969 = vmatprep.subr.bf16.mxu0 0
    %970 = vmatpush1.bf16.msra.mxu0 %v957
    %971 = vmatprep.subr.bf16.mxu0 0
    %972 = vmatpush1.bf16.msra.mxu0 %v956
    %973 = vmatprep.subr.bf16.mxu0 0
    %974 = vmatpush1.bf16.msra.mxu0 %v955
    %975 = vmatprep.subr.bf16.mxu0 0
    %976 = vmatpush1.bf16.msra.mxu0 %v954
    %977 = vmatprep.subr.bf16.mxu0 0
    %978 = vmatpush1.bf16.msra.mxu0 %v953
    %979 = vmatprep.subr.bf16.mxu0 0
    %980 = vmatpush1.bf16.msra.mxu0 %v952
    %981 = vmatprep.subr.bf16.mxu0 0
    %982 = vmatpush1.bf16.msra.mxu0 %v951
    %983 = vmatprep.subr.bf16.mxu0 0
    %984 = vmatpush2.bf16.msra.mxu0 0
    %985 = vmatprep.subr.bf16.mxu0 0
    %986 = vmatpush2.bf16.msra.mxu0 0
    %987 = vmatprep.subr.bf16.mxu0 0
    %988 = vmatpush2.bf16.msra.mxu0 0
    %989 = vmatprep.subr.bf16.mxu0 0
    %990 = vmatpush2.bf16.msra.mxu0 0
    %991 = vmatprep.subr.bf16.mxu0 0
    %992 = vmatpush2.bf16.msra.mxu0 0
    %993 = vmatprep.subr.bf16.mxu0 0
    %994 = vmatpush2.bf16.msra.mxu0 0
    %995 = vmatprep.subr.bf16.mxu0 0
    %996 = vmatpush2.bf16.msra.mxu0 0
    %997 = vmatprep.subr.bf16.mxu0 0
    %998 = vmatpush2.bf16.msra.mxu0 0
    %999 = vmatprep.mubr.bf16.mxu0 0
    %1000 = vmatmul.mubr.bf16.gmra.mxu0 %v911
    %v1001 = vpop.f32.mrf.mxu0
    %v1002 = vadd.f32 0.0, %v1001
    %v1003 = vpop.f32.mrf.mxu0
    %v1004 = vpop.f32.mrf.mxu0
    %v1005 = vadd.f32 0.0, %v1004
    %v1006 = vpop.f32.mrf.mxu0
    %1007 = vmatprep.mubr.bf16.mxu0 0
    %1008 = vmatmul.mubr.bf16.gmra.mxu0 %v912
    %v1009 = vpop.f32.mrf.mxu0
    %v1010 = vadd.f32 0.0, %v1009
    %v1011 = vpop.f32.mrf.mxu0
    %v1012 = vpop.f32.mrf.mxu0
    %v1013 = vadd.f32 0.0, %v1012
    %v1014 = vpop.f32.mrf.mxu0
    %1015 = vmatprep.mubr.bf16.mxu0 0
    %1016 = vmatmul.mubr.bf16.gmra.mxu0 %v913
    %v1017 = vpop.f32.mrf.mxu0
    %v1018 = vadd.f32 0.0, %v1017
    %v1019 = vpop.f32.mrf.mxu0
    %v1020 = vpop.f32.mrf.mxu0
    %v1021 = vadd.f32 0.0, %v1020
    %v1022 = vpop.f32.mrf.mxu0
    %1023 = vmatprep.mubr.bf16.mxu0 0
    %1024 = vmatmul.mubr.bf16.gmra.mxu0 %v914
    %v1025 = vpop.f32.mrf.mxu0
    %v1026 = vadd.f32 0.0, %v1025
    %v1027 = vpop.f32.mrf.mxu0
    %v1028 = vpop.f32.mrf.mxu0
    %v1029 = vadd.f32 0.0, %v1028
    %v1030 = vpop.f32.mrf.mxu0
    %1031 = vmatprep.mubr.bf16.mxu0 0
    %1032 = vmatmul.mubr.bf16.gmra.mxu0 %v915
    %v1033 = vpop.f32.mrf.mxu0
    %v1034 = vadd.f32 0.0, %v1033
    %v1035 = vpop.f32.mrf.mxu0
    %v1036 = vpop.f32.mrf.mxu0
    %v1037 = vadd.f32 0.0, %v1036
    %v1038 = vpop.f32.mrf.mxu0
    %1039 = vmatprep.mubr.bf16.mxu0 0
    %1040 = vmatmul.mubr.bf16.gmra.mxu0 %v916
    %v1041 = vpop.f32.mrf.mxu0
    %v1042 = vadd.f32 0.0, %v1041
    %v1043 = vpop.f32.mrf.mxu0
    %v1044 = vpop.f32.mrf.mxu0
    %v1045 = vadd.f32 0.0, %v1044
    %v1046 = vpop.f32.mrf.mxu0
    %1047 = vmatprep.mubr.bf16.mxu0 0
    %1048 = vmatmul.mubr.bf16.gmra.mxu0 %v917
    %v1049 = vpop.f32.mrf.mxu0
    %v1050 = vadd.f32 0.0, %v1049
    %v1051 = vpop.f32.mrf.mxu0
    %v1052 = vpop.f32.mrf.mxu0
    %v1053 = vadd.f32 0.0, %v1052
    %v1054 = vpop.f32.mrf.mxu0
    %1055 = vmatprep.mubr.bf16.mxu0 0
    %1056 = vmatmul.mubr.bf16.gmra.mxu0 %v918
    %v1057 = vpop.f32.mrf.mxu0
    %v1058 = vadd.f32 0.0, %v1057
    %v1059 = vpop.f32.mrf.mxu0
    %v1060 = vpop.f32.mrf.mxu0
    %v1061 = vadd.f32 0.0, %v1060
    %v1062 = vpop.f32.mrf.mxu0
    %1063 = vdwg.mxu0
    %1064 = vst [vmem:[#allocation11] sm:$0xff] %v1002
    %1065 = vst [vmem:[#allocation11 + $0x8] sm:$0xff] %v1005
    %1066 = vst [vmem:[#allocation11 + $0x10] sm:$0xff] %v1010
    %1067 = vst [vmem:[#allocation11 + $0x18] sm:$0xff] %v1013
    %1068 = vst [vmem:[#allocation11 + $0x20] sm:$0xff] %v1018
    %1069 = vst [vmem:[#allocation11 + $0x28] sm:$0xff] %v1021
    %1070 = vst [vmem:[#allocation11 + $0x30] sm:$0xff] %v1026
    %1071 = vst [vmem:[#allocation11 + $0x38] sm:$0xff] %v1029
    %1072 = vst [vmem:[#allocation11 + $0x40] sm:$0xff] %v1034
    %1073 = vst [vmem:[#allocation11 + $0x48] sm:$0xff] %v1037
    %1074 = vst [vmem:[#allocation11 + $0x50] sm:$0xff] %v1042
    %1075 = vst [vmem:[#allocation11 + $0x58] sm:$0xff] %v1045
    %1076 = vst [vmem:[#allocation11 + $0x60] sm:$0xff] %v1050
    %1077 = vst [vmem:[#allocation11 + $0x68] sm:$0xff] %v1053
    %1078 = vst [vmem:[#allocation11 + $0x70] sm:$0xff] %v1058
    %1079 = vst [vmem:[#allocation11 + $0x78] sm:$0xff] %v1061
    // Predicated region
    $region42: #{tpu_custom_call.1} parent=1 // pred_check
      _
    $region43: #{tpu_custom_call.1} parent=1 // pred_check_branch
      %1081 = sbr.rel (0) target = $region45
    $region44: #{tpu_custom_call.1} parent=1 // pred_region
      %s1083 = ssub.s32 2048, 2048
      %1084 = vsyncadd [#allocation4], %s1083
      %s1085 = sshll.u32 [#allocation11], 4
      %s1086 = int_to_ptr.vmem [resolvable:$true] %s1085
      %1091 = dma.vmem_to_hbm [thread:$0]  %s1086, 2048, %s5, [#allocation4], 128, 128, 8
    $region45: #{tpu_custom_call.1} parent=1 // pred_fallthru
      _
    // Predicated region
    $region46: #{tpu_custom_call.1} parent=1 // pred_check
      _
    $region47: #{tpu_custom_call.1} parent=1 // pred_check_branch
      %1093 = sbr.rel (0) target = $region49
    $region48: #{tpu_custom_call.1} parent=1 // pred_region
      %1094 = dma.done [#allocation4], 2048
    $region49: #{tpu_custom_call.1} parent=1 // pred_fallthru
      _
    %1095 = vsyncpa [#allocation3], 1
    %1096 = vsyncpa [#allocation6], 1
    %1097 = vsyncpa [#allocation9], 1
    %1098 = vsyncpa [#allocation4], 1

</llo_original>
